<compile_context>
chip_gen: v6e
topology: v6e:2x2x1
jax: 0.10.0
libtpu: 0.0.40
codegen_flags: <defaults>
</compile_context>

<pallas_src>
from functools import partial

import jax
import jax.numpy as jnp
from jax import lax
from jax.experimental import pallas as pl
from jax.experimental.pallas import tpu as pltpu


def _round_up(x, m):
    return ((x + m - 1) // m) * m


# ----------------------- Path 1: VMEM-resident table ------------------------


def _embed_onehot_kernel(ids_ref, table_ref, out_ref):
    # ids_ref   : VMEM (tb, 1)  int32   -- token ids for this block
    # table_ref : VMEM (V, Dp)  float32 -- full table (constant block, fetched once)
    # out_ref   : VMEM (tb, Dp) float32 -- lane-dense (Dp % 128 == 0)
    ids = ids_ref[...]                                        # (tb, 1)
    tb = ids.shape[0]
    v = table_ref.shape[0]
    col = lax.broadcasted_iota(jnp.int32, (tb, v), 1)
    onehot = (col == ids).astype(table_ref.dtype)             # (tb, V) vectorized gather
    out_ref[...] = jnp.dot(
        onehot, table_ref[...], preferred_element_type=jnp.float32
    ).astype(out_ref.dtype)


# ----------------------- Path 2: HBM table, DMA gather ----------------------


def _embed_dma_kernel(ids_ref, table_hbm, out_ref, copy_sems, *,
                      token_block, pack, inflight):
    # ids_ref   : SMEM (Np,) int32            -- all token ids (scalar prefetch)
    # table_hbm : HBM  (V, D) float32         -- raw table ref, no auto-DMA
    # out_ref   : VMEM (tb // pack, pack * D) -- token-packed, lane-dense block
    # copy_sems : DMA semaphores, shape (inflight,)
    base = pl.program_id(0) * token_block
    d = table_hbm.shape[-1]

    def start_row(row, lane_p, slot):
        # `row`/`slot` may be traced; `lane_p` is a static Python int, so the
        # lane offset of the DMA destination is static.
        t = row * pack + lane_p
        idx = ids_ref[base + t]
        src = table_hbm.at[pl.ds(idx, 1), :]                       # (1, d)
        dst = out_ref.at[pl.ds(row, 1), pl.ds(lane_p * d, d)]      # (1, d)
        pltpu.make_async_copy(src, dst, copy_sems.at[slot]).start()

    def wait_slot(slot):
        # Only the semaphore + transfer shape matter for the wait descriptor.
        pltpu.make_async_copy(
            table_hbm.at[pl.ds(0, 1), :],
            out_ref.at[pl.ds(0, 1), pl.ds(0, d)],
            copy_sems.at[slot],
        ).wait()

    # Prime the window: `inflight` row gathers outstanding.
    for w in range(inflight):                       # static, inflight <= token_block
        start_row(w // pack, w % pack, w)

    @pl.loop(0, token_block // pack)
    def _(r):
        for p in range(pack):                       # static; pack in {1, 2, 4, ...}
            t = r * pack + p
            slot = t % inflight
            wait_slot(slot)                         # row for token t has landed

            @pl.when(t + inflight < token_block)
            def _():
                start_row(r + (p + inflight) // pack, (p + inflight) % pack, slot)


# --------------------------------- wrapper ----------------------------------


def word_embed(word_ids, table, *, token_block=256, inflight=8,
               force_hbm_gather=False, vmem_budget_bytes=8 * 1024 * 1024):
    """Pallas equivalent of WordEmbed.forward: table[word_ids] -> (B, S, D)."""
    B, S = word_ids.shape
    V, D = table.shape
    N = B * S

    # Clamp ids: a bad id would otherwise be a silent OOB gather (no runtime check).
    ids = jnp.clip(word_ids.reshape(N).astype(jnp.int32), 0, V - 1)

    # Tokens packed per 128-lane output row on the HBM-gather path.
    if D % 128 == 0:
        pack = 1
    elif 128 % D == 0:
        pack = 128 // D
    else:
        pack = 1  # TODO(synk): D neither divides nor is a multiple of 128 -> rows stay lane-sparse.

    # Padded feature dim for the VMEM-resident path (lane-dense stores / MXU operand).
    Dp = _round_up(D, 128)

    tb_a = min(token_block, _round_up(N, 8))
    vmem_path_bytes = 4 * (2 * V * Dp            # table, double-buffered
                           + tb_a * V            # one-hot intermediate
                           + 2 * tb_a * Dp       # output blocks, double-buffered
                           + 2 * tb_a)           # ids blocks
    use_vmem_path = (not force_hbm_gather) and vmem_path_bytes <= vmem_budget_bytes

    if use_vmem_path:
        # ---- small table: VMEM-resident one-hot MXU gather ----
        tb = tb_a
        Np = _round_up(N, tb)
        ids_pad = jnp.pad(ids, (0, Np - N)).reshape(Np, 1)
        table_p = table if Dp == D else jnp.pad(table, ((0, 0), (0, Dp - D)))
        out = pl.pallas_call(
            _embed_onehot_kernel,
            out_shape=jax.ShapeDtypeStruct((Np, Dp), table.dtype),
            grid=(Np // tb,),
            in_specs=[
                pl.BlockSpec((tb, 1), lambda i: (i, 0)),
                pl.BlockSpec((V, Dp), lambda i: (0, 0)),   # constant block: fetched once
            ],
            out_specs=pl.BlockSpec((tb, Dp), lambda i: (i, 0)),
            compiler_params=pltpu.CompilerParams(
                dimension_semantics=("parallel",),
                vmem_limit_bytes=32 * 1024 * 1024,
            ),
        )(ids_pad, table_p)
        out = out[:N, :D]
    else:
        # ---- general path: table stays in HBM, windowed per-row DMA gather ----
        # TODO(synk): for very long B*S, block the ids instead of prefetching all
        # of them (1D SMEM pads to next_pow2(4*N)).
        tb = _round_up(min(token_block, _round_up(N, 8 * pack)), 8 * pack)
        Np = _round_up(N, tb)
        nfl = max(1, min(inflight, tb))
        ids_pad = jnp.pad(ids, (0, Np - N))
        lane_d = pack * D
        out_packed = pl.pallas_call(
            partial(_embed_dma_kernel, token_block=tb, pack=pack, inflight=nfl),
            out_shape=jax.ShapeDtypeStruct((Np // pack, lane_d), table.dtype),
            grid_spec=pltpu.PrefetchScalarGridSpec(
                num_scalar_prefetch=1,
                grid=(Np // tb,),
                in_specs=[pl.BlockSpec(memory_space=pl.ANY)],   # table stays in HBM
                out_specs=pl.BlockSpec((tb // pack, lane_d), lambda i, ids: (i, 0)),
                scratch_shapes=[pltpu.SemaphoreType.DMA((nfl,))],
            ),
            compiler_params=pltpu.CompilerParams(
                dimension_semantics=("parallel",),
            ),
        )(ids_pad, table)
        out = out_packed.reshape(Np, D)[:N]

    return out.reshape(B, S, D)


if __name__ == "__main__":
    # Small synthetic config consistent with the module:
    #   vocab V = 64, embedding dim D = 32, batch B = 2, seq S = 8.
    V, D = 64, 32
    B, S = 2, 8

    key = jax.random.PRNGKey(0)
    k_tab, k_ids = jax.random.split(key)

    word_embedding = jax.random.normal(k_tab, (V, D), dtype=jnp.float32)
    word_ids = jax.random.randint(k_ids, (B, S), 0, V, dtype=jnp.int32)

    ref = jnp.take(word_embedding, word_ids, axis=0)

    # Path 1 (auto-selected for this tiny table): VMEM-resident one-hot MXU gather.
    out_vmem = jax.block_until_ready(word_embed(word_ids, word_embedding))
    # Path 2 (forced): HBM-resident table + per-row DMA gather (the scalable path).
    out_hbm = jax.block_until_ready(
        word_embed(word_ids, word_embedding, force_hbm_gather=True))

    assert out_vmem.shape == (B, S, D) and out_vmem.dtype == jnp.float32
    assert out_hbm.shape == (B, S, D) and out_hbm.dtype == jnp.float32
    assert jnp.allclose(out_vmem, ref, rtol=0.0, atol=1e-6), "one-hot path mismatch"
    assert jnp.array_equal(out_hbm, ref), "DMA-gather path mismatch"

    print("KERNEL_OK")
</pallas_src>

<mosaic_0001>
module attributes {stable_mosaic.version = 11 : i64} {
  func.func @_embed_onehot_kernel(%arg0: i32, %arg1: memref<16x1xi32, #tpu.memory_space<vmem>>, %arg2: memref<64x128xf32, #tpu.memory_space<vmem>>, %arg3: memref<16x128xf32, #tpu.memory_space<vmem>>) attributes {dimension_semantics = [#tpu.dimension_semantics<parallel>], iteration_bounds = array<i64: 1>, scalar_prefetch = 0 : i64, scratch_operands = 0 : i64, tpu.core_type = #tpu.core_type<tc>, window_params = [{transform_indices = @transform_0, window_bounds = array<i64: 16, 1>}, {pipeline_mode = #tpu.pipeline_mode<synchronous>, transform_indices = @transform_1, window_bounds = array<i64: 64, 128>}, {transform_indices = @transform_2, window_bounds = array<i64: 16, 128>}]} {
    %c0 = arith.constant 0 : index
    %c0_0 = arith.constant 0 : index
    %0 = vector.load %arg1[%c0, %c0_0] : memref<16x1xi32, #tpu.memory_space<vmem>>, vector<16x1xi32>
    %1 = tpu.iota {dimensions = array<i32: 1>} : vector<16x64xi32>
    %2 = vector.broadcast %0 : vector<16x1xi32> to vector<16x64xi32>
    %3 = arith.cmpi eq, %1, %2 : vector<16x64xi32>
    %4 = arith.extui %3 : vector<16x64xi1> to vector<16x64xi32>
    %5 = arith.sitofp %4 : vector<16x64xi32> to vector<16x64xf32>
    %c0_1 = arith.constant 0 : index
    %c0_2 = arith.constant 0 : index
    %6 = vector.load %arg2[%c0_1, %c0_2] : memref<64x128xf32, #tpu.memory_space<vmem>>, vector<64x128xf32>
    %cst = arith.constant dense<0.000000e+00> : vector<16x128xf32>
    %7 = tpu.matmul %5, %6, %cst {dimension_numbers = #tpu.dot_dimension_numbers<[1], [0], [0], [1], [0, 0, 1, 1], [], []>} : vector<16x64xf32>, vector<64x128xf32>, vector<16x128xf32> -> vector<16x128xf32>
    %c0_3 = arith.constant 0 : index
    %c0_4 = arith.constant 0 : index
    %8 = vector.load %arg3[%c0_3, %c0_4] : memref<16x128xf32, #tpu.memory_space<vmem>>, vector<16x128xf32>
    tpu.vector_store %arg3[%c0_3, %c0_4], %7 {strides = array<i32>} : memref<16x128xf32, #tpu.memory_space<vmem>>, vector<16x128xf32>,
    return
  }
  func.func @transform_0(%arg0: i32) -> (i32, i32) {
    %c0_i32 = arith.constant 0 : i32
    %c0_i32_0 = arith.constant 0 : i32
    return %arg0, %c0_i32 : i32, i32
  }
  func.func @transform_1(%arg0: i32) -> (i32, i32) {
    %c0_i32 = arith.constant 0 : i32
    %c0_i32_0 = arith.constant 0 : i32
    %c0_i32_1 = arith.constant 0 : i32
    return %c0_i32, %c0_i32_0 : i32, i32
  }
  func.func @transform_2(%arg0: i32) -> (i32, i32) {
    %c0_i32 = arith.constant 0 : i32
    %c0_i32_0 = arith.constant 0 : i32
    return %arg0, %c0_i32 : i32, i32
  }
}

</mosaic_0001>

<llo_original>
// kernel: tpu_custom_call.1
$region0: #{tpu_custom_call.1}
  #allocation0 [shape = 'u32[]', space=smem, size = 0x4, offset = 0x4, fixed_abs, tag = 'smem constant byte address 0x4 - core index']
  #allocation1 [shape = 'u32[144,128]{1,0:T(1,128)}', space=vmem, size = 0x12000, scoped, tag = 'internal scratch']
  %s0 = inlined_call_operand.vmem [shape: s32[16,1], index: 0, kind: input, shape index: {}]
  %s1 = inlined_call_operand.hbm [shape: f32[64,128], index: 1, kind: input, shape index: {}]
  %s2 = inlined_call_operand.hbm [shape: f32[16,128], index: 2, kind: output, shape index: {}]
  %s3 = sld [smem:[#allocation0]]
  $region22: #{tpu_custom_call.1} parent=0
    _
  %s5 = ssub.s32 1, %s3
  %s6 = scalar_select 0, %s5, %s3
  $region1: #{tpu_custom_call.1} parent=0
    #allocation2 [shape = 'u8[32768]{0}', space=vmem, size = 0x8000, scoped, tag = 'input window, operand 1, single buffered']
    #allocation3 [shape = 's32[1]{0}', space=sflag, size = 0x4, scoped, tag = 'scoped memory for tpu_custom_call.1']
    #allocation4 [shape = 's32[1]{0}', space=sflag, size = 0x4, scoped, tag = 'scoped memory for tpu_custom_call.1']
    #allocation5 [shape = 'u8[8192]{0}', space=vmem, size = 0x2000, scoped, tag = 'output window, operand 0, single buffered']
    %7 = vsyncpa [#allocation3], 0
    %8 = vsyncpa [#allocation4], 0
    // Predicated region
    $region2: #{tpu_custom_call.1} parent=1 // pred_check
      _
    $region3: #{tpu_custom_call.1} parent=1 // pred_check_branch
      %10 = sbr.rel (0) target = $region5
    $region4: #{tpu_custom_call.1} parent=1 // pred_region
      _
    $region5: #{tpu_custom_call.1} parent=1 // pred_fallthru
      _
    // Predicated region
    $region6: #{tpu_custom_call.1} parent=1 // pred_check
      _
    $region7: #{tpu_custom_call.1} parent=1 // pred_check_branch
      %12 = sbr.rel (0) target = $region9
    $region8: #{tpu_custom_call.1} parent=1 // pred_region
      %s14 = ssub.s32 1024, 1024
      %15 = vsyncadd [#allocation3], %s14
      %s16 = sshll.u32 [#allocation2], 4
      %s17 = int_to_ptr.vmem [resolvable:$true] %s16
      %22 = dma.hbm_to_vmem [thread:$0]  %s1, 1024, %s17, [#allocation3], 128, 128, 8
    $region9: #{tpu_custom_call.1} parent=1 // pred_fallthru
      _
    // Predicated region
    $region10: #{tpu_custom_call.1} parent=1 // pred_check
      _
    $region11: #{tpu_custom_call.1} parent=1 // pred_check_branch
      %24 = sbr.rel (0) target = $region13
    $region12: #{tpu_custom_call.1} parent=1 // pred_region
      %25 = dma.done [#allocation3], 1024
    $region13: #{tpu_custom_call.1} parent=1 // pred_fallthru
      _
    %v26 = vld [vmem:[%s0] sm:$0xff]
    %v27 = vld [vmem:[%s0 + $0x8] sm:$0xff]
    %v28 = vlaneseq
    %v29 = vand.u32 %v28, 127
    %30 = vset.pattern.permute.xlu0 0
    %31 = vperm.xlu0 %30, %v26
    %v32 = vpop.permute.xlu0 %31
    %33 = vset.pattern.permute.xlu0 0
    %34 = vperm.xlu0 %33, %v27
    %v35 = vpop.permute.xlu0 %34
    %vm36 = vcmp.eq.s32.totalorder %v29, %v32
    %vm37 = vcmp.eq.s32.totalorder %v29, %v35
    %v38 = vsel %vm36, 1, 0
    %v39 = vsel %vm37, 1, 0
    %v40 = vcvt.s32.f32 %v38
    %v41 = vcvt.s32.f32 %v39
    %v42 = vld [vmem:[#allocation2] sm:$0xff]
    %v43 = vld [vmem:[#allocation2 + $0x8] sm:$0xff]
    %v44 = vld [vmem:[#allocation2 + $0x10] sm:$0xff]
    %v45 = vld [vmem:[#allocation2 + $0x18] sm:$0xff]
    %v46 = vld [vmem:[#allocation2 + $0x20] sm:$0xff]
    %v47 = vld [vmem:[#allocation2 + $0x28] sm:$0xff]
    %v48 = vld [vmem:[#allocation2 + $0x30] sm:$0xff]
    %v49 = vld [vmem:[#allocation2 + $0x38] sm:$0xff]
    %vm50 = vcmask 523264
    %v52 = vsel %vm50, %v40, 0
    %v55 = vsel %vm50, %v41, 0
    %57 = vmatprep.subr.mxu0 0.0
    %58 = vmatpush1.msra.mxu0 0.0
    %59 = vmatprep.subr.mxu0 0.0
    %60 = vmatpush1.msra.mxu0 0.0
    %61 = vmatprep.subr.mxu0 0.0
    %62 = vmatpush1.msra.mxu0 0.0
    %63 = vmatprep.subr.mxu0 0.0
    %64 = vmatpush1.msra.mxu0 0.0
    %65 = vmatprep.subr.mxu0 0.0
    %66 = vmatpush1.msra.mxu0 0.0
    %67 = vmatprep.subr.mxu0 0.0
    %68 = vmatpush1.msra.mxu0 0.0
    %69 = vmatprep.subr.mxu0 0.0
    %70 = vmatpush1.msra.mxu0 0.0
    %71 = vmatprep.subr.mxu0 0.0
    %72 = vmatpush1.msra.mxu0 0.0
    %73 = vmatprep.subr.mxu0 0.0
    %74 = vmatpush1.msra.mxu0 %v49
    %75 = vmatprep.subr.mxu0 0.0
    %76 = vmatpush1.msra.mxu0 %v48
    %77 = vmatprep.subr.mxu0 0.0
    %78 = vmatpush1.msra.mxu0 %v47
    %79 = vmatprep.subr.mxu0 0.0
    %80 = vmatpush1.msra.mxu0 %v46
    %81 = vmatprep.subr.mxu0 0.0
    %82 = vmatpush1.msra.mxu0 %v45
    %83 = vmatprep.subr.mxu0 0.0
    %84 = vmatpush1.msra.mxu0 %v44
    %85 = vmatprep.subr.mxu0 0.0
    %86 = vmatpush1.msra.mxu0 %v43
    %87 = vmatprep.subr.mxu0 0.0
    %88 = vmatpush1.msra.mxu0 %v42
    %89 = vmatprep.subr.mxu0 0.0
    %90 = vmatpush2.msra.mxu0 0.0
    %91 = vmatprep.subr.mxu0 0.0
    %92 = vmatpush2.msra.mxu0 0.0
    %93 = vmatprep.subr.mxu0 0.0
    %94 = vmatpush2.msra.mxu0 0.0
    %95 = vmatprep.subr.mxu0 0.0
    %96 = vmatpush2.msra.mxu0 0.0
    %97 = vmatprep.subr.mxu0 0.0
    %98 = vmatpush2.msra.mxu0 0.0
    %99 = vmatprep.subr.mxu0 0.0
    %100 = vmatpush2.msra.mxu0 0.0
    %101 = vmatprep.subr.mxu0 0.0
    %102 = vmatpush2.msra.mxu0 0.0
    %103 = vmatprep.subr.mxu0 0.0
    %104 = vmatpush2.msra.mxu0 0.0
    %105 = vmatprep.subr.mxu0 0.0
    %106 = vmatpush2.msra.mxu0 0.0
    %107 = vmatprep.subr.mxu0 0.0
    %108 = vmatpush2.msra.mxu0 0.0
    %109 = vmatprep.subr.mxu0 0.0
    %110 = vmatpush2.msra.mxu0 0.0
    %111 = vmatprep.subr.mxu0 0.0
    %112 = vmatpush2.msra.mxu0 0.0
    %113 = vmatprep.subr.mxu0 0.0
    %114 = vmatpush2.msra.mxu0 0.0
    %115 = vmatprep.subr.mxu0 0.0
    %116 = vmatpush2.msra.mxu0 0.0
    %117 = vmatprep.subr.mxu0 0.0
    %118 = vmatpush2.msra.mxu0 0.0
    %119 = vmatprep.subr.mxu0 0.0
    %120 = vmatpush2.msra.mxu0 0.0
    %121 = vmatprep.mubr.f32.mxu0 0.0
    %122 = vmatmul.mubr.f32.gmra.mxu0 %v52
    %v123 = vpop.f32.mrf.mxu0
    %v124 = vadd.f32 0.0, %v123
    %v125 = vpop.f32.mrf.mxu0
    %126 = vmatprep.mubr.f32.mxu0 0.0
    %127 = vmatmul.mubr.f32.gmra.mxu0 %v55
    %v128 = vpop.f32.mrf.mxu0
    %v129 = vadd.f32 0.0, %v128
    %v130 = vpop.f32.mrf.mxu0
    %131 = vdwg.mxu0
    %132 = vst [vmem:[#allocation5] sm:$0xff] %v124
    %133 = vst [vmem:[#allocation5 + $0x8] sm:$0xff] %v129
    // Predicated region
    $region14: #{tpu_custom_call.1} parent=1 // pred_check
      _
    $region15: #{tpu_custom_call.1} parent=1 // pred_check_branch
      %135 = sbr.rel (0) target = $region17
    $region16: #{tpu_custom_call.1} parent=1 // pred_region
      %s137 = ssub.s32 256, 256
      %138 = vsyncadd [#allocation4], %s137
      %s139 = sshll.u32 [#allocation5], 4
      %s140 = int_to_ptr.vmem [resolvable:$true] %s139
      %145 = dma.vmem_to_hbm [thread:$0]  %s140, 256, %s2, [#allocation4], 128, 128, 8
    $region17: #{tpu_custom_call.1} parent=1 // pred_fallthru
      _
    // Predicated region
    $region18: #{tpu_custom_call.1} parent=1 // pred_check
      _
    $region19: #{tpu_custom_call.1} parent=1 // pred_check_branch
      %147 = sbr.rel (0) target = $region21
    $region20: #{tpu_custom_call.1} parent=1 // pred_region
      %148 = dma.done [#allocation4], 256
    $region21: #{tpu_custom_call.1} parent=1 // pred_fallthru
      _
    %149 = vsyncpa [#allocation3], 1
    %150 = vsyncpa [#allocation4], 1

</llo_original>
